<compile_context>
chip_gen: v5e
topology: v5e:2x2
jax: 0.10.0
libtpu: 0.0.40
codegen_flags: <defaults>
</compile_context>

<pallas_src>
import functools

import jax
import jax.numpy as jnp
from jax.experimental import pallas as pl
from jax.experimental.pallas import tpu as pltpu

_MAX_LANE_TILE = 16 * 1024  # elements per block along the lane (last) axis
_MAX_ROW_TILE = 8           # sublane-aligned row block


def _copy_kernel(x_ref, o_ref):
    # Pure copy: the BlockSpecs already window only the kept prefix of each row.
    o_ref[...] = x_ref[...]


def _slice_kernel(x_ref, o_ref, *, kept):
    # Fallback (kept width not 128-aligned): whole-array block, slice in VMEM.
    o_ref[...] = x_ref[:, :kept]


def _pick_lane_tile(kept):
    if kept <= _MAX_LANE_TILE:
        return kept
    # Largest multiple of 128 that divides `kept` and fits the tile budget
    # (keeps every block fully in-bounds — no partial lane blocks).
    for cand in range(_MAX_LANE_TILE, 127, -128):
        if kept % cand == 0:
            return cand
    return 128  # unreachable when kept % 128 == 0


@functools.partial(jax.jit, static_argnums=1)
def cut_layer(x, cut_idx):
    """Pallas equivalent of CutLayer.forward: returns x[:, :cut_idx]."""
    if not isinstance(cut_idx, int):
        raise TypeError("cut_idx must be a static Python int")
    N, C = x.shape[0], x.shape[1]
    if not 0 < cut_idx <= C:
        raise ValueError(f"cut_idx must be in (0, {C}], got {cut_idx}")

    spatial = 1
    for d in x.shape[2:]:
        spatial *= d
    total = C * spatial          # flattened row length of the input
    kept = cut_idx * spatial     # contiguous kept prefix per batch row

    # Free (metadata) reshape to a lane-dense 2-D view.
    x2 = x.reshape(N, total)

    if kept % 128 == 0:
        lane_tile = _pick_lane_tile(kept)
        row_tile = _MAX_ROW_TILE if N % _MAX_ROW_TILE == 0 else N
        grid = (N // row_tile, kept // lane_tile)
        out2 = pl.pallas_call(
            _copy_kernel,
            out_shape=jax.ShapeDtypeStruct((N, kept), x.dtype),
            grid=grid,
            # Only the first `kept` lanes of each input row are ever DMA'd:
            # the grid stops at kept // lane_tile, so the (C - cut_idx) cut
            # channels never leave HBM.
            in_specs=[pl.BlockSpec((row_tile, lane_tile), lambda i, j: (i, j))],
            out_specs=pl.BlockSpec((row_tile, lane_tile), lambda i, j: (i, j)),
            compiler_params=pltpu.CompilerParams(
                dimension_semantics=("parallel", "parallel")),
        )(x2)
    else:
        # Non-128-aligned kept width: single whole-array block (reads the full
        # row). Only hit when cut_idx * H * W is not a multiple of 128.
        out2 = pl.pallas_call(
            functools.partial(_slice_kernel, kept=kept),
            out_shape=jax.ShapeDtypeStruct((N, kept), x.dtype),
            grid=(),
            in_specs=[pl.BlockSpec((N, total), lambda: (0, 0))],
            out_specs=pl.BlockSpec((N, kept), lambda: (0, 0)),
        )(x2)

    return out2.reshape((N, cut_idx) + x.shape[2:])


if __name__ == "__main__":
    key = jax.random.PRNGKey(0)
    # NCHW input, cut along the channel axis.
    x = jax.random.normal(key, (2, 4, 16, 16), dtype=jnp.float32)
    cut_idx = 2

    y = jax.block_until_ready(cut_layer(x, cut_idx))

    ref = x[:, :cut_idx]
    assert y.shape == (2, 2, 16, 16), y.shape
    assert bool(jnp.array_equal(y, ref)), "mismatch vs reference slice"
    print("KERNEL_OK")
</pallas_src>

<mosaic_0001>
module attributes {stable_mosaic.version = 11 : i64} {
  func.func @_copy_kernel(%arg0: i32, %arg1: i32, %arg2: memref<2x512xf32, #tpu.memory_space<vmem>>, %arg3: memref<2x512xf32, #tpu.memory_space<vmem>>) attributes {dimension_semantics = [#tpu.dimension_semantics<parallel>, #tpu.dimension_semantics<parallel>], iteration_bounds = array<i64: 1, 1>, scalar_prefetch = 0 : i64, scratch_operands = 0 : i64, tpu.core_type = #tpu.core_type<tc>, window_params = [{transform_indices = @transform_0, window_bounds = array<i64: 2, 512>}, {transform_indices = @transform_1, window_bounds = array<i64: 2, 512>}]} {
    %c0 = arith.constant 0 : index
    %c0_0 = arith.constant 0 : index
    %0 = vector.load %arg2[%c0, %c0_0] : memref<2x512xf32, #tpu.memory_space<vmem>>, vector<2x512xf32>
    %c0_1 = arith.constant 0 : index
    %c0_2 = arith.constant 0 : index
    %1 = vector.load %arg3[%c0_1, %c0_2] : memref<2x512xf32, #tpu.memory_space<vmem>>, vector<2x512xf32>
    tpu.vector_store %arg3[%c0_1, %c0_2], %0 {strides = array<i32>} : memref<2x512xf32, #tpu.memory_space<vmem>>, vector<2x512xf32>,
    return
  }
  func.func @transform_0(%arg0: i32, %arg1: i32) -> (i32, i32) {
    %c0_i32 = arith.constant 0 : i32
    return %arg0, %arg1 : i32, i32
  }
  func.func @transform_1(%arg0: i32, %arg1: i32) -> (i32, i32) {
    %c0_i32 = arith.constant 0 : i32
    return %arg0, %arg1 : i32, i32
  }
}

</mosaic_0001>

<llo_original>
// kernel: cut_layer.1
$region0: #{cut_layer.1}
  #allocation0 [shape = 'u32[]', space=smem, size = 0x4, offset = 0x4, fixed_abs, tag = 'smem constant byte address 0x4 - core index']
  #allocation1 [shape = 'u32[72,128]{1,0:T(1,128)}', space=vmem, size = 0x9000, scoped, tag = 'internal scratch']
  %s0 = inlined_call_operand.vmem [shape: f32[2,1024], index: 0, kind: input, shape index: {}]
  %s1 = inlined_call_operand.vmem [shape: f32[2,512], index: 1, kind: output, shape index: {}]
  %s2 = sld [smem:[#allocation0]]
  $region14: #{cut_layer.1} parent=0
    _
  %s4 = ssub.s32 1, %s2
  %s5 = scalar_select 0, %s4, %s2
  // Predicated region
  $region2: #{cut_layer.1} parent=0 // pred_check
    _
  $region3: #{cut_layer.1} parent=0 // pred_check_branch
    %7 = sbr.rel (0) target = $region5
  $region4: #{cut_layer.1} parent=0 // pred_region
    _
  $region5: #{cut_layer.1} parent=0 // pred_fallthru
    _
  %v8 = vld [vmem:[%s0] sm:$0xff]
  %9 = vst [vmem:[%s1] sm:$0xff] %v8
  // Predicated region
  $region6: #{cut_layer.1} parent=0 // pred_check
    _
  $region7: #{cut_layer.1} parent=0 // pred_check_branch
    %11 = sbr.rel (0) target = $region9
  $region8: #{cut_layer.1} parent=0 // pred_region
    _
  $region9: #{cut_layer.1} parent=0 // pred_fallthru
    _
  // Predicated region
  $region10: #{cut_layer.1} parent=0 // pred_check
    _
  $region11: #{cut_layer.1} parent=0 // pred_check_branch
    %13 = sbr.rel (0) target = $region13
  $region12: #{cut_layer.1} parent=0 // pred_region
    _
  $region13: #{cut_layer.1} parent=0 // pred_fallthru
    _

</llo_original>
